<compile_context>
chip_gen: v7x
topology: tpu7x:2x2x1
jax: 0.10.0
libtpu: 0.0.40
codegen_flags: <defaults>
</compile_context>

<pallas_src>
import jax
import jax.numpy as jnp
from jax.experimental import pallas as pl
from jax.experimental.pallas import tpu as pltpu


def _round_up(n, m):
    return ((n + m - 1) // m) * m


def continue_model_kernel(x_ref, w1_ref, b1_ref, w2_ref, b2_ref, o_ref):
    # Layer 1: Linear on the MXU (f32 accumulation) + bias + ReLU on the VPU.
    h = jnp.dot(x_ref[...], w1_ref[...], preferred_element_type=jnp.float32)
    h = jnp.maximum(h + b1_ref[...], 0.0)                 # (TB, H_pad)

    # Layer 2 (out_features == 1): VPU multiply + lane reduction instead of a
    # wasteful N=1 MXU pass.  w2 is passed as a (1, H_pad) row.
    logits = jnp.sum(h * w2_ref[...], axis=-1)            # (TB,)
    logits = logits + b2_ref[0, 0]                        # scalar bias (SMEM)

    # Lane-dense store: batch lives on the lane axis of the (1, TB) out block.
    o_ref[...] = logits[None, :].astype(o_ref.dtype)


def continue_model_forward(x, w1, b1, w2, b2, *, block_b=512):
    """x: (B, input_dim); w1: (input_dim, hidden); b1: (hidden,)/(1,hidden);
    w2: (hidden, 1); b2: scalar/(1,1).  Returns logits of shape (B, 1)."""
    B, in_dim = x.shape
    hid = w1.shape[1]
    f32 = jnp.float32

    # Pad feature dims to 128 lanes; pick a batch tile that is a multiple of
    # 128 (lane-dense output) and covers the (possibly tiny) batch.
    in_pad = _round_up(in_dim, 128)
    hid_pad = _round_up(hid, 128)
    tb = _round_up(min(block_b, _round_up(B, 128)), 128)
    b_pad = _round_up(B, tb)
    n_tiles = b_pad // tb

    x_p = jnp.zeros((b_pad, in_pad), f32).at[:B, :in_dim].set(x.astype(f32))
    w1_p = jnp.zeros((in_pad, hid_pad), f32).at[:in_dim, :hid].set(w1.astype(f32))
    b1_p = jnp.zeros((1, hid_pad), f32).at[:, :hid].set(
        jnp.reshape(b1, (1, hid)).astype(f32))
    w2_p = jnp.zeros((1, hid_pad), f32).at[:, :hid].set(
        jnp.reshape(w2, (1, hid)).astype(f32))
    b2_p = jnp.reshape(b2, (1, 1)).astype(f32)

    cost = pl.CostEstimate(
        flops=2 * b_pad * in_pad * hid_pad + 3 * b_pad * hid_pad,
        transcendentals=0,
        bytes_accessed=4 * (x_p.size + w1_p.size + b1_p.size + w2_p.size
                            + b2_p.size + b_pad),
    )

    out = pl.pallas_call(
        continue_model_kernel,
        out_shape=jax.ShapeDtypeStruct((1, b_pad), f32),
        grid=(n_tiles,),
        in_specs=[
            pl.BlockSpec((tb, in_pad), lambda i: (i, 0)),        # x: streamed
            pl.BlockSpec((in_pad, hid_pad), lambda i: (0, 0)),   # w1: resident
            pl.BlockSpec((1, hid_pad), lambda i: (0, 0)),        # b1: resident
            pl.BlockSpec((1, hid_pad), lambda i: (0, 0)),        # w2 row: resident
            pl.BlockSpec(memory_space=pltpu.MemorySpace.SMEM),   # b2: scalar
        ],
        out_specs=pl.BlockSpec((1, tb), lambda i: (0, i)),       # lane-dense
        compiler_params=pltpu.CompilerParams(
            dimension_semantics=("parallel",),
        ),
        cost_estimate=cost,
    )(x_p, w1_p, b1_p, w2_p, b2_p)

    # Un-pad and restore the PyTorch (B, 1) logits layout.
    return out[0, :B].reshape(B, 1).astype(x.dtype)


def init_params(key, input_dim, hidden_dim):
    """Deterministic synthetic parameters (nn.Linear-style uniform init).
    Weights are stored (in_features, out_features), i.e. transposed vs torch."""
    k1, k2, k3, k4 = jax.random.split(key, 4)
    lim1 = 1.0 / (input_dim ** 0.5)
    lim2 = 1.0 / (hidden_dim ** 0.5)
    w1 = jax.random.uniform(k1, (input_dim, hidden_dim), jnp.float32, -lim1, lim1)
    b1 = jax.random.uniform(k2, (1, hidden_dim), jnp.float32, -lim1, lim1)
    w2 = jax.random.uniform(k3, (hidden_dim, 1), jnp.float32, -lim2, lim2)
    b2 = jax.random.uniform(k4, (1, 1), jnp.float32, -lim2, lim2)
    return w1, b1, w2, b2


if __name__ == "__main__":
    batch, input_dim, hidden_dim = 8, 16, 32

    key = jax.random.PRNGKey(0)
    kx, kp = jax.random.split(key)
    x = jax.random.normal(kx, (batch, input_dim), jnp.float32)
    w1, b1, w2, b2 = init_params(kp, input_dim, hidden_dim)

    logits = continue_model_forward(x, w1, b1, w2, b2)
    logits = jax.block_until_ready(logits)

    # Pure-JAX reference (same math as the PyTorch forward).
    ref = jnp.maximum(x @ w1 + b1, 0.0) @ w2 + b2
    assert logits.shape == (batch, 1)
    assert jnp.allclose(logits, ref, atol=1e-5, rtol=1e-5)

    print("KERNEL_OK")
</pallas_src>

<mosaic_0001>
module attributes {stable_mosaic.version = 11 : i64} {
  func.func @continue_model_kernel(%arg0: i32, %arg1: memref<128x128xf32, #tpu.memory_space<vmem>>, %arg2: memref<128x128xf32, #tpu.memory_space<vmem>>, %arg3: memref<1x128xf32, #tpu.memory_space<vmem>>, %arg4: memref<1x128xf32, #tpu.memory_space<vmem>>, %arg5: memref<1x1xf32, #tpu.memory_space<smem>>, %arg6: memref<1x128xf32, #tpu.memory_space<vmem>>) attributes {dimension_semantics = [#tpu.dimension_semantics<parallel>], iteration_bounds = array<i64: 1>, scalar_prefetch = 0 : i64, scratch_operands = 0 : i64, tpu.core_type = #tpu.core_type<tc>, window_params = [{transform_indices = @transform_0, window_bounds = array<i64: 128, 128>}, {pipeline_mode = #tpu.pipeline_mode<synchronous>, transform_indices = @transform_1, window_bounds = array<i64: 128, 128>}, {pipeline_mode = #tpu.pipeline_mode<synchronous>, transform_indices = @transform_2, window_bounds = array<i64: 1, 128>}, {pipeline_mode = #tpu.pipeline_mode<synchronous>, transform_indices = @transform_3, window_bounds = array<i64: 1, 128>}, {transform_indices = @transform_4, window_bounds = array<i64: 1, 1>}, {transform_indices = @transform_5, window_bounds = array<i64: 1, 128>}]} {
    %c0 = arith.constant 0 : index
    %c0_0 = arith.constant 0 : index
    %0 = vector.load %arg1[%c0, %c0_0] : memref<128x128xf32, #tpu.memory_space<vmem>>, vector<128x128xf32>
    %c0_1 = arith.constant 0 : index
    %c0_2 = arith.constant 0 : index
    %1 = vector.load %arg2[%c0_1, %c0_2] : memref<128x128xf32, #tpu.memory_space<vmem>>, vector<128x128xf32>
    %cst = arith.constant dense<0.000000e+00> : vector<128x128xf32>
    %2 = tpu.matmul %0, %1, %cst {dimension_numbers = #tpu.dot_dimension_numbers<[1], [0], [0], [1], [0, 0, 1, 1], [], []>} : vector<128x128xf32>, vector<128x128xf32>, vector<128x128xf32> -> vector<128x128xf32>
    %c0_3 = arith.constant 0 : index
    %c0_4 = arith.constant 0 : index
    %3 = vector.load %arg3[%c0_3, %c0_4] : memref<1x128xf32, #tpu.memory_space<vmem>>, vector<1x128xf32>
    %4 = vector.broadcast %3 : vector<1x128xf32> to vector<128x128xf32>
    %5 = arith.addf %2, %4 : vector<128x128xf32>
    %cst_5 = arith.constant 0.000000e+00 : f32
    %6 = vector.broadcast %cst_5 : f32 to vector<128x128xf32>
    %7 = arith.maximumf %5, %6 : vector<128x128xf32>
    %c0_6 = arith.constant 0 : index
    %c0_7 = arith.constant 0 : index
    %8 = vector.load %arg4[%c0_6, %c0_7] : memref<1x128xf32, #tpu.memory_space<vmem>>, vector<1x128xf32>
    %9 = vector.broadcast %8 : vector<1x128xf32> to vector<128x128xf32>
    %10 = arith.mulf %7, %9 : vector<128x128xf32>
    %cst_8 = arith.constant dense<0.000000e+00> : vector<128xf32>
    %11 = vector.multi_reduction <add>, %10, %cst_8 [1] : vector<128x128xf32> to vector<128xf32>
    %c0_9 = arith.constant 0 : index
    %c0_10 = arith.constant 0 : index
    %12 = memref.load %arg5[%c0_9, %c0_10] : memref<1x1xf32, #tpu.memory_space<smem>>
    %13 = vector.broadcast %12 : f32 to vector<128xf32>
    %14 = arith.addf %11, %13 : vector<128xf32>
    %15 = vector.shape_cast %14 : vector<128xf32> to vector<1x128xf32>
    %c0_11 = arith.constant 0 : index
    %c0_12 = arith.constant 0 : index
    %16 = vector.load %arg6[%c0_11, %c0_12] : memref<1x128xf32, #tpu.memory_space<vmem>>, vector<1x128xf32>
    tpu.vector_store %arg6[%c0_11, %c0_12], %15 {strides = array<i32>} : memref<1x128xf32, #tpu.memory_space<vmem>>, vector<1x128xf32>,
    return
  }
  func.func @transform_0(%arg0: i32) -> (i32, i32) {
    %c0_i32 = arith.constant 0 : i32
    %c0_i32_0 = arith.constant 0 : i32
    return %arg0, %c0_i32 : i32, i32
  }
  func.func @transform_1(%arg0: i32) -> (i32, i32) {
    %c0_i32 = arith.constant 0 : i32
    %c0_i32_0 = arith.constant 0 : i32
    %c0_i32_1 = arith.constant 0 : i32
    return %c0_i32, %c0_i32_0 : i32, i32
  }
  func.func @transform_2(%arg0: i32) -> (i32, i32) {
    %c0_i32 = arith.constant 0 : i32
    %c0_i32_0 = arith.constant 0 : i32
    %c0_i32_1 = arith.constant 0 : i32
    return %c0_i32, %c0_i32_0 : i32, i32
  }
  func.func @transform_3(%arg0: i32) -> (i32, i32) {
    %c0_i32 = arith.constant 0 : i32
    %c0_i32_0 = arith.constant 0 : i32
    %c0_i32_1 = arith.constant 0 : i32
    return %c0_i32, %c0_i32_0 : i32, i32
  }
  func.func @transform_4(%arg0: i32) -> (i32, i32) {
    %c0_i32 = arith.constant 0 : i32
    %c0_i32_0 = arith.constant 0 : i32
    %c0_i32_1 = arith.constant 0 : i32
    return %c0_i32, %c0_i32_0 : i32, i32
  }
  func.func @transform_5(%arg0: i32) -> (i32, i32) {
    %c0_i32 = arith.constant 0 : i32
    %c0_i32_0 = arith.constant 0 : i32
    return %c0_i32, %arg0 : i32, i32
  }
}

</mosaic_0001>

<llo_original>
// kernel: tpu_custom_call.1
$region0: #{tpu_custom_call.1}
  #allocation0 [shape = 'u32[]', space=smem, size = 0x4, offset = 0x4, fixed_abs, tag = 'smem constant byte address 0x4 - core index']
  #allocation1 [shape = 'u32[144,128]{1,0:T(1,128)}', space=vmem, size = 0x12000, scoped, tag = 'internal scratch']
  #allocation2 [shape = 'f32[1,1]{1,0:T(1,128)S(6)}', space=smem, size = 0x200, scoped, tag = 'scoped memory for tpu_custom_call.1']
  %s0 = inlined_call_operand.hbm [shape: f32[128,128], index: 0, kind: input, shape index: {}]
  %s1 = inlined_call_operand.hbm [shape: f32[128,128], index: 1, kind: input, shape index: {}]
  %s2 = inlined_call_operand.vmem [shape: f32[1,128], index: 2, kind: input, shape index: {}]
  %s3 = inlined_call_operand.vmem [shape: f32[1,128], index: 3, kind: input, shape index: {}]
  %s4 = inlined_call_operand.<no memory space> [shape: f32[1,1], index: 4, kind: input, shape index: {}]
  %s5 = inlined_call_operand.hbm [shape: f32[1,128], index: 5, kind: output, shape index: {}]
  %s6 = sld [smem:[#allocation0]]
  $region38: #{tpu_custom_call.1} parent=0
    _
  %s8 = ssub.s32 1, %s6
  %s9 = scalar_select 0, %s8, %s6
  %10 = sst [smem:[#allocation2]] %s4
  $region1: #{tpu_custom_call.1} parent=0
    #allocation3 [shape = 'u8[65536]{0}', space=vmem, size = 0x10000, scoped, tag = 'input window, operand 0, single buffered']
    #allocation4 [shape = 's32[1]{0}', space=sflag, size = 0x4, scoped, tag = 'scoped memory for tpu_custom_call.1']
    #allocation5 [shape = 's32[1]{0}', space=sflag, size = 0x4, scoped, tag = 'scoped memory for tpu_custom_call.1']
    #allocation6 [shape = 'u8[65536]{0}', space=vmem, size = 0x10000, scoped, tag = 'input window, operand 1, single buffered']
    #allocation7 [shape = 's32[1]{0}', space=sflag, size = 0x4, scoped, tag = 'scoped memory for tpu_custom_call.1']
    #allocation8 [shape = 'u8[512]{0}', space=vmem, size = 0x400, scoped, tag = 'output window, operand 0, single buffered']
    %11 = vsyncpa [#allocation4], 0
    %12 = vsyncpa [#allocation7], 0
    %13 = vsyncpa [#allocation5], 0
    // Predicated region
    $region2: #{tpu_custom_call.1} parent=1 // pred_check
      _
    $region3: #{tpu_custom_call.1} parent=1 // pred_check_branch
      %15 = sbr.rel (0) target = $region5
    $region4: #{tpu_custom_call.1} parent=1 // pred_region
      %s17 = ssub.s32 2048, 2048
      %18 = vsyncadd [#allocation4], %s17
      %s19 = sshll.u32 [#allocation3], 4
      %s20 = int_to_ptr.vmem [resolvable:$true] %s19
      %25 = dma.hbm_to_vmem [thread:$0]  %s0, 2048, %s20, [#allocation4], 128, 128, 8
    $region5: #{tpu_custom_call.1} parent=1 // pred_fallthru
      _
    // Predicated region
    $region6: #{tpu_custom_call.1} parent=1 // pred_check
      _
    $region7: #{tpu_custom_call.1} parent=1 // pred_check_branch
      %27 = sbr.rel (0) target = $region9
    $region8: #{tpu_custom_call.1} parent=1 // pred_region
      %s29 = ssub.s32 2048, 2048
      %30 = vsyncadd [#allocation7], %s29
      %s31 = sshll.u32 [#allocation6], 4
      %s32 = int_to_ptr.vmem [resolvable:$true] %s31
      %37 = dma.hbm_to_vmem [thread:$0]  %s1, 2048, %s32, [#allocation7], 128, 128, 8
    $region9: #{tpu_custom_call.1} parent=1 // pred_fallthru
      _
    // Predicated region
    $region10: #{tpu_custom_call.1} parent=1 // pred_check
      _
    $region11: #{tpu_custom_call.1} parent=1 // pred_check_branch
      %39 = sbr.rel (0) target = $region13
    $region12: #{tpu_custom_call.1} parent=1 // pred_region
      _
    $region13: #{tpu_custom_call.1} parent=1 // pred_fallthru
      _
    // Predicated region
    $region14: #{tpu_custom_call.1} parent=1 // pred_check
      _
    $region15: #{tpu_custom_call.1} parent=1 // pred_check_branch
      %41 = sbr.rel (0) target = $region17
    $region16: #{tpu_custom_call.1} parent=1 // pred_region
      _
    $region17: #{tpu_custom_call.1} parent=1 // pred_fallthru
      _
    // Predicated region
    $region18: #{tpu_custom_call.1} parent=1 // pred_check
      _
    $region19: #{tpu_custom_call.1} parent=1 // pred_check_branch
      %43 = sbr.rel (0) target = $region21
    $region20: #{tpu_custom_call.1} parent=1 // pred_region
      _
    $region21: #{tpu_custom_call.1} parent=1 // pred_fallthru
      _
    // Predicated region
    $region22: #{tpu_custom_call.1} parent=1 // pred_check
      _
    $region23: #{tpu_custom_call.1} parent=1 // pred_check_branch
      %45 = sbr.rel (0) target = $region25
    $region24: #{tpu_custom_call.1} parent=1 // pred_region
      %46 = dma.done [#allocation4], 2048
    $region25: #{tpu_custom_call.1} parent=1 // pred_fallthru
      _
    // Predicated region
    $region26: #{tpu_custom_call.1} parent=1 // pred_check
      _
    $region27: #{tpu_custom_call.1} parent=1 // pred_check_branch
      %48 = sbr.rel (0) target = $region29
    $region28: #{tpu_custom_call.1} parent=1 // pred_region
      %49 = dma.done [#allocation7], 2048
    $region29: #{tpu_custom_call.1} parent=1 // pred_fallthru
      _
    %v50 = vld [vmem:[#allocation3] sm:$0xff]
    %v51 = vld [vmem:[#allocation3 + $0x8] sm:$0xff]
    %v52 = vld [vmem:[#allocation3 + $0x10] sm:$0xff]
    %v53 = vld [vmem:[#allocation3 + $0x18] sm:$0xff]
    %v54 = vld [vmem:[#allocation3 + $0x20] sm:$0xff]
    %v55 = vld [vmem:[#allocation3 + $0x28] sm:$0xff]
    %v56 = vld [vmem:[#allocation3 + $0x30] sm:$0xff]
    %v57 = vld [vmem:[#allocation3 + $0x38] sm:$0xff]
    %v58 = vld [vmem:[#allocation3 + $0x40] sm:$0xff]
    %v59 = vld [vmem:[#allocation3 + $0x48] sm:$0xff]
    %v60 = vld [vmem:[#allocation3 + $0x50] sm:$0xff]
    %v61 = vld [vmem:[#allocation3 + $0x58] sm:$0xff]
    %v62 = vld [vmem:[#allocation3 + $0x60] sm:$0xff]
    %v63 = vld [vmem:[#allocation3 + $0x68] sm:$0xff]
    %v64 = vld [vmem:[#allocation3 + $0x70] sm:$0xff]
    %v65 = vld [vmem:[#allocation3 + $0x78] sm:$0xff]
    %v66 = vld [vmem:[#allocation6] sm:$0xff]
    %v67 = vld [vmem:[#allocation6 + $0x8] sm:$0xff]
    %v68 = vld [vmem:[#allocation6 + $0x10] sm:$0xff]
    %v69 = vld [vmem:[#allocation6 + $0x18] sm:$0xff]
    %v70 = vld [vmem:[#allocation6 + $0x20] sm:$0xff]
    %v71 = vld [vmem:[#allocation6 + $0x28] sm:$0xff]
    %v72 = vld [vmem:[#allocation6 + $0x30] sm:$0xff]
    %v73 = vld [vmem:[#allocation6 + $0x38] sm:$0xff]
    %v74 = vld [vmem:[#allocation6 + $0x40] sm:$0xff]
    %v75 = vld [vmem:[#allocation6 + $0x48] sm:$0xff]
    %v76 = vld [vmem:[#allocation6 + $0x50] sm:$0xff]
    %v77 = vld [vmem:[#allocation6 + $0x58] sm:$0xff]
    %v78 = vld [vmem:[#allocation6 + $0x60] sm:$0xff]
    %v79 = vld [vmem:[#allocation6 + $0x68] sm:$0xff]
    %v80 = vld [vmem:[#allocation6 + $0x70] sm:$0xff]
    %v81 = vld [vmem:[#allocation6 + $0x78] sm:$0xff]
    %v82 = vld [vmem:[%s2] sm:$0x1]
    %v84 = vlaneseq
    %v85 = vshrl.u32 %v84, 7
    %v86 = vsub.s32 0, %v85
    %v87 = vrot.slane %v82, %v86
    %89 = vmatprep.subr.mxu0 0.0
    %90 = vmatpush1.msra.mxu0 %v66
    %91 = vmatprep.subr.mxu0 0.0
    %92 = vmatpush1.msra.mxu0 %v67
    %93 = vmatprep.subr.mxu0 0.0
    %94 = vmatpush1.msra.mxu0 %v68
    %95 = vmatprep.subr.mxu0 0.0
    %96 = vmatpush1.msra.mxu0 %v69
    %97 = vmatprep.subr.mxu0 0.0
    %98 = vmatpush1.msra.mxu0 %v70
    %99 = vmatprep.subr.mxu0 0.0
    %100 = vmatpush1.msra.mxu0 %v71
    %101 = vmatprep.subr.mxu0 0.0
    %102 = vmatpush1.msra.mxu0 %v72
    %103 = vmatprep.subr.mxu0 0.0
    %104 = vmatpush1.msra.mxu0 %v73
    %105 = vmatprep.subr.mxu0 0.0
    %106 = vmatpush1.msra.mxu0 %v74
    %107 = vmatprep.subr.mxu0 0.0
    %108 = vmatpush1.msra.mxu0 %v75
    %109 = vmatprep.subr.mxu0 0.0
    %110 = vmatpush1.msra.mxu0 %v76
    %111 = vmatprep.subr.mxu0 0.0
    %112 = vmatpush1.msra.mxu0 %v77
    %113 = vmatprep.subr.mxu0 0.0
    %114 = vmatpush1.msra.mxu0 %v78
    %115 = vmatprep.subr.mxu0 0.0
    %116 = vmatpush1.msra.mxu0 %v79
    %117 = vmatprep.subr.mxu0 0.0
    %118 = vmatpush1.msra.mxu0 %v80
    %119 = vmatprep.subr.mxu0 0.0
    %120 = vmatpush1.msra.mxu0 %v81
    %121 = vmatprep.subr.mxu0 0.0
    %122 = vmatpush1.msra.mxu0 0.0
    %123 = vmatprep.subr.mxu0 0.0
    %124 = vmatpush1.msra.mxu0 0.0
    %125 = vmatprep.subr.mxu0 0.0
    %126 = vmatpush1.msra.mxu0 0.0
    %127 = vmatprep.subr.mxu0 0.0
    %128 = vmatpush1.msra.mxu0 0.0
    %129 = vmatprep.subr.mxu0 0.0
    %130 = vmatpush1.msra.mxu0 0.0
    %131 = vmatprep.subr.mxu0 0.0
    %132 = vmatpush1.msra.mxu0 0.0
    %133 = vmatprep.subr.mxu0 0.0
    %134 = vmatpush1.msra.mxu0 0.0
    %135 = vmatprep.subr.mxu0 0.0
    %136 = vmatpush1.msra.mxu0 0.0
    %137 = vmatprep.subr.mxu0 0.0
    %138 = vmatpush1.msra.mxu0 0.0
    %139 = vmatprep.subr.mxu0 0.0
    %140 = vmatpush1.msra.mxu0 0.0
    %141 = vmatprep.subr.mxu0 0.0
    %142 = vmatpush1.msra.mxu0 0.0
    %143 = vmatprep.subr.mxu0 0.0
    %144 = vmatpush1.msra.mxu0 0.0
    %145 = vmatprep.subr.mxu0 0.0
    %146 = vmatpush1.msra.mxu0 0.0
    %147 = vmatprep.subr.mxu0 0.0
    %148 = vmatpush1.msra.mxu0 0.0
    %149 = vmatprep.subr.mxu0 0.0
    %150 = vmatpush1.msra.mxu0 0.0
    %151 = vmatprep.subr.mxu0 0.0
    %152 = vmatpush1.msra.mxu0 0.0
    %153 = vmatprep.mubr.f32.mxu0 0.0
    %154 = vmatmul.mubr.f32.gmra.mrb[0].mxu0 %v50
    %v155 = vpop.f32.mrb[0].mxu0
    %v156 = vadd.f32 %v87, %v155
    %v157 = vpop.f32.mrb[0].mxu0
    %158 = vmatprep.mubr.f32.mxu0 0.0
    %159 = vmatmul.mubr.f32.gmra.mrb[0].mxu0 %v51
    %v160 = vpop.f32.mrb[0].mxu0
    %v161 = vadd.f32 %v87, %v160
    %v162 = vpop.f32.mrb[0].mxu0
    %163 = vmatprep.mubr.f32.mxu0 0.0
    %164 = vmatmul.mubr.f32.gmra.mrb[0].mxu0 %v52
    %v165 = vpop.f32.mrb[0].mxu0
    %v166 = vadd.f32 %v87, %v165
    %v167 = vpop.f32.mrb[0].mxu0
    %168 = vmatprep.mubr.f32.mxu0 0.0
    %169 = vmatmul.mubr.f32.gmra.mrb[0].mxu0 %v53
    %v170 = vpop.f32.mrb[0].mxu0
    %v171 = vadd.f32 %v87, %v170
    %v172 = vpop.f32.mrb[0].mxu0
    %173 = vmatprep.mubr.f32.mxu0 0.0
    %174 = vmatmul.mubr.f32.gmra.mrb[0].mxu0 %v54
    %v175 = vpop.f32.mrb[0].mxu0
    %v176 = vadd.f32 %v87, %v175
    %v177 = vpop.f32.mrb[0].mxu0
    %178 = vmatprep.mubr.f32.mxu0 0.0
    %179 = vmatmul.mubr.f32.gmra.mrb[0].mxu0 %v55
    %v180 = vpop.f32.mrb[0].mxu0
    %v181 = vadd.f32 %v87, %v180
    %v182 = vpop.f32.mrb[0].mxu0
    %183 = vmatprep.mubr.f32.mxu0 0.0
    %184 = vmatmul.mubr.f32.gmra.mrb[0].mxu0 %v56
    %v185 = vpop.f32.mrb[0].mxu0
    %v186 = vadd.f32 %v87, %v185
    %v187 = vpop.f32.mrb[0].mxu0
    %188 = vmatprep.mubr.f32.mxu0 0.0
    %189 = vmatmul.mubr.f32.gmra.mrb[0].mxu0 %v57
    %v190 = vpop.f32.mrb[0].mxu0
    %v191 = vadd.f32 %v87, %v190
    %v192 = vpop.f32.mrb[0].mxu0
    %193 = vmatprep.mubr.f32.mxu0 0.0
    %194 = vmatmul.mubr.f32.gmra.mrb[0].mxu0 %v58
    %v195 = vpop.f32.mrb[0].mxu0
    %v196 = vadd.f32 %v87, %v195
    %v197 = vpop.f32.mrb[0].mxu0
    %198 = vmatprep.mubr.f32.mxu0 0.0
    %199 = vmatmul.mubr.f32.gmra.mrb[0].mxu0 %v59
    %v200 = vpop.f32.mrb[0].mxu0
    %v201 = vadd.f32 %v87, %v200
    %v202 = vpop.f32.mrb[0].mxu0
    %203 = vmatprep.mubr.f32.mxu0 0.0
    %204 = vmatmul.mubr.f32.gmra.mrb[0].mxu0 %v60
    %v205 = vpop.f32.mrb[0].mxu0
    %v206 = vadd.f32 %v87, %v205
    %v207 = vpop.f32.mrb[0].mxu0
    %208 = vmatprep.mubr.f32.mxu0 0.0
    %209 = vmatmul.mubr.f32.gmra.mrb[0].mxu0 %v61
    %v210 = vpop.f32.mrb[0].mxu0
    %v211 = vadd.f32 %v87, %v210
    %v212 = vpop.f32.mrb[0].mxu0
    %213 = vmatprep.mubr.f32.mxu0 0.0
    %214 = vmatmul.mubr.f32.gmra.mrb[0].mxu0 %v62
    %v215 = vpop.f32.mrb[0].mxu0
    %v216 = vadd.f32 %v87, %v215
    %v217 = vpop.f32.mrb[0].mxu0
    %218 = vmatprep.mubr.f32.mxu0 0.0
    %219 = vmatmul.mubr.f32.gmra.mrb[0].mxu0 %v63
    %v220 = vpop.f32.mrb[0].mxu0
    %v221 = vadd.f32 %v87, %v220
    %v222 = vpop.f32.mrb[0].mxu0
    %223 = vmatprep.mubr.f32.mxu0 0.0
    %224 = vmatmul.mubr.f32.gmra.mrb[0].mxu0 %v64
    %v225 = vpop.f32.mrb[0].mxu0
    %v226 = vadd.f32 %v87, %v225
    %v227 = vpop.f32.mrb[0].mxu0
    %228 = vmatprep.mubr.f32.mxu0 0.0
    %229 = vmatmul.mubr.f32.gmra.mrb[0].mxu0 %v65
    %v230 = vpop.f32.mrb[0].mxu0
    %v231 = vadd.f32 %v87, %v230
    %v232 = vpop.f32.mrb[0].mxu0
    %233 = vdwg.mxu0
    %v234 = vmax.f32 %v156, 0.0
    %v235 = vmax.f32 %v161, 0.0
    %v236 = vmax.f32 %v166, 0.0
    %v237 = vmax.f32 %v171, 0.0
    %v238 = vmax.f32 %v176, 0.0
    %v239 = vmax.f32 %v181, 0.0
    %v240 = vmax.f32 %v186, 0.0
    %v241 = vmax.f32 %v191, 0.0
    %v242 = vmax.f32 %v196, 0.0
    %v243 = vmax.f32 %v201, 0.0
    %v244 = vmax.f32 %v206, 0.0
    %v245 = vmax.f32 %v211, 0.0
    %v246 = vmax.f32 %v216, 0.0
    %v247 = vmax.f32 %v221, 0.0
    %v248 = vmax.f32 %v226, 0.0
    %v249 = vmax.f32 %v231, 0.0
    %v250 = vld [vmem:[%s3] sm:$0x1]
    %v252 = vlaneseq
    %v253 = vshrl.u32 %v252, 7
    %v254 = vsub.s32 0, %v253
    %v255 = vrot.slane %v250, %v254
    %v257 = vmul.f32 %v234, %v255
    %v258 = vmul.f32 %v235, %v255
    %v259 = vmul.f32 %v236, %v255
    %v260 = vmul.f32 %v237, %v255
    %v261 = vmul.f32 %v238, %v255
    %v262 = vmul.f32 %v239, %v255
    %v263 = vmul.f32 %v240, %v255
    %v264 = vmul.f32 %v241, %v255
    %v265 = vmul.f32 %v242, %v255
    %v266 = vmul.f32 %v243, %v255
    %v267 = vmul.f32 %v244, %v255
    %v268 = vmul.f32 %v245, %v255
    %v269 = vmul.f32 %v246, %v255
    %v270 = vmul.f32 %v247, %v255
    %v271 = vmul.f32 %v248, %v255
    %v272 = vmul.f32 %v249, %v255
    %273 = vadd.xlane.f32.xlu0 %v257
    %v274 = vpop.xlane.xlu0 %273
    %275 = vadd.xlane.f32.xlu0 %v258
    %v276 = vpop.xlane.xlu0 %275
    %277 = vadd.xlane.f32.xlu0 %v259
    %v278 = vpop.xlane.xlu0 %277
    %279 = vadd.xlane.f32.xlu0 %v260
    %v280 = vpop.xlane.xlu0 %279
    %281 = vadd.xlane.f32.xlu0 %v261
    %v282 = vpop.xlane.xlu0 %281
    %283 = vadd.xlane.f32.xlu0 %v262
    %v284 = vpop.xlane.xlu0 %283
    %285 = vadd.xlane.f32.xlu0 %v263
    %v286 = vpop.xlane.xlu0 %285
    %287 = vadd.xlane.f32.xlu0 %v264
    %v288 = vpop.xlane.xlu0 %287
    %289 = vadd.xlane.f32.xlu0 %v265
    %v290 = vpop.xlane.xlu0 %289
    %291 = vadd.xlane.f32.xlu0 %v266
    %v292 = vpop.xlane.xlu0 %291
    %293 = vadd.xlane.f32.xlu0 %v267
    %v294 = vpop.xlane.xlu0 %293
    %295 = vadd.xlane.f32.xlu0 %v268
    %v296 = vpop.xlane.xlu0 %295
    %297 = vadd.xlane.f32.xlu0 %v269
    %v298 = vpop.xlane.xlu0 %297
    %299 = vadd.xlane.f32.xlu0 %v270
    %v300 = vpop.xlane.xlu0 %299
    %301 = vadd.xlane.f32.xlu0 %v271
    %v302 = vpop.xlane.xlu0 %301
    %303 = vadd.xlane.f32.xlu0 %v272
    %v304 = vpop.xlane.xlu0 %303
    %s305 = sld [smem:[#allocation2]]
    %v306 = vstv %s305
    %v307 = vadd.f32 %v274, %v306
    %v308 = vadd.f32 %v276, %v306
    %v309 = vadd.f32 %v278, %v306
    %v310 = vadd.f32 %v280, %v306
    %v311 = vadd.f32 %v282, %v306
    %v312 = vadd.f32 %v284, %v306
    %v313 = vadd.f32 %v286, %v306
    %v314 = vadd.f32 %v288, %v306
    %v315 = vadd.f32 %v290, %v306
    %v316 = vadd.f32 %v292, %v306
    %v317 = vadd.f32 %v294, %v306
    %v318 = vadd.f32 %v296, %v306
    %v319 = vadd.f32 %v298, %v306
    %v320 = vadd.f32 %v300, %v306
    %v321 = vadd.f32 %v302, %v306
    %v322 = vadd.f32 %v304, %v306
    %v339 = vlaneseq
    %v340 = vand.u32 %v339, 127
    %v341 = vlaneseq
    %v342 = vshrl.u32 %v341, 7
    %v343 = vsub.s32 %v340, %v342
    %v344 = vrot.slane %v307, %v343
    %v345 = vadd.s32 %v340, 4294967288
    %v346 = vlaneseq
    %v347 = vshrl.u32 %v346, 7
    %v348 = vsub.s32 %v345, %v347
    %v349 = vrot.slane %v308, %v348
    %vm350 = vcmask 130112
    %v351 = vsel %vm350, %v349, %v344
    %v352 = vadd.s32 %v340, 4294967280
    %v353 = vlaneseq
    %v354 = vshrl.u32 %v353, 7
    %v355 = vsub.s32 %v352, %v354
    %v356 = vrot.slane %v309, %v355
    %vm357 = vcmask 195712
    %v358 = vsel %vm357, %v356, %v351
    %v359 = vadd.s32 %v340, 4294967272
    %v360 = vlaneseq
    %v361 = vshrl.u32 %v360, 7
    %v362 = vsub.s32 %v359, %v361
    %v363 = vrot.slane %v310, %v362
    %vm364 = vcmask 261312
    %v365 = vsel %vm364, %v363, %v358
    %v366 = vadd.s32 %v340, 4294967264
    %v367 = vlaneseq
    %v368 = vshrl.u32 %v367, 7
    %v369 = vsub.s32 %v366, %v368
    %v370 = vrot.slane %v311, %v369
    %vm371 = vcmask 326912
    %v372 = vsel %vm371, %v370, %v365
    %v373 = vadd.s32 %v340, 4294967256
    %v374 = vlaneseq
    %v375 = vshrl.u32 %v374, 7
    %v376 = vsub.s32 %v373, %v375
    %v377 = vrot.slane %v312, %v376
    %vm378 = vcmask 392512
    %v379 = vsel %vm378, %v377, %v372
    %v380 = vadd.s32 %v340, 4294967248
    %v381 = vlaneseq
    %v382 = vshrl.u32 %v381, 7
    %v383 = vsub.s32 %v380, %v382
    %v384 = vrot.slane %v313, %v383
    %vm385 = vcmask 458112
    %v386 = vsel %vm385, %v384, %v379
    %v387 = vadd.s32 %v340, 4294967240
    %v388 = vlaneseq
    %v389 = vshrl.u32 %v388, 7
    %v390 = vsub.s32 %v387, %v389
    %v391 = vrot.slane %v314, %v390
    %vm392 = vcmask 523712
    %v393 = vsel %vm392, %v391, %v386
    %v394 = vadd.s32 %v340, 4294967232
    %v395 = vlaneseq
    %v396 = vshrl.u32 %v395, 7
    %v397 = vsub.s32 %v394, %v396
    %v398 = vrot.slane %v315, %v397
    %vm399 = vcmask 589312
    %v400 = vsel %vm399, %v398, %v393
    %v401 = vadd.s32 %v340, 4294967224
    %v402 = vlaneseq
    %v403 = vshrl.u32 %v402, 7
    %v404 = vsub.s32 %v401, %v403
    %v405 = vrot.slane %v316, %v404
    %vm406 = vcmask 654912
    %v407 = vsel %vm406, %v405, %v400
    %v408 = vadd.s32 %v340, 4294967216
    %v409 = vlaneseq
    %v410 = vshrl.u32 %v409, 7
    %v411 = vsub.s32 %v408, %v410
    %v412 = vrot.slane %v317, %v411
    %vm413 = vcmask 720512
    %v414 = vsel %vm413, %v412, %v407
    %v415 = vadd.s32 %v340, 4294967208
    %v416 = vlaneseq
    %v417 = vshrl.u32 %v416, 7
    %v418 = vsub.s32 %v415, %v417
    %v419 = vrot.slane %v318, %v418
    %vm420 = vcmask 786112
    %v421 = vsel %vm420, %v419, %v414
    %v422 = vadd.s32 %v340, 4294967200
    %v423 = vlaneseq
    %v424 = vshrl.u32 %v423, 7
    %v425 = vsub.s32 %v422, %v424
    %v426 = vrot.slane %v319, %v425
    %vm427 = vcmask 851712
    %v428 = vsel %vm427, %v426, %v421
    %v429 = vadd.s32 %v340, 4294967192
    %v430 = vlaneseq
    %v431 = vshrl.u32 %v430, 7
    %v432 = vsub.s32 %v429, %v431
    %v433 = vrot.slane %v320, %v432
    %vm434 = vcmask 917312
    %v435 = vsel %vm434, %v433, %v428
    %v436 = vadd.s32 %v340, 4294967184
    %v437 = vlaneseq
    %v438 = vshrl.u32 %v437, 7
    %v439 = vsub.s32 %v436, %v438
    %v440 = vrot.slane %v321, %v439
    %vm441 = vcmask 982912
    %v442 = vsel %vm441, %v440, %v435
    %v443 = vadd.s32 %v340, 4294967176
    %v444 = vlaneseq
    %v445 = vshrl.u32 %v444, 7
    %v446 = vsub.s32 %v443, %v445
    %v447 = vrot.slane %v322, %v446
    %vm448 = vcmask 1048512
    %v449 = vsel %vm448, %v447, %v442
    %451 = vst [vmem:[#allocation8] sm:$0x1] %v449
    // Predicated region
    $region30: #{tpu_custom_call.1} parent=1 // pred_check
      _
    $region31: #{tpu_custom_call.1} parent=1 // pred_check_branch
      %453 = sbr.rel (0) target = $region33
    $region32: #{tpu_custom_call.1} parent=1 // pred_region
      %s455 = ssub.s32 16, 16
      %456 = vsyncadd [#allocation5], %s455
      %s458 = sshll.u32 [#allocation8], 4
      %s459 = int_to_ptr.vmem [resolvable:$true] %s458
      %461 = dma.vmem_to_hbm [thread:$0]  %s459, 16, %s5, [#allocation5]
    $region33: #{tpu_custom_call.1} parent=1 // pred_fallthru
      _
    // Predicated region
    $region34: #{tpu_custom_call.1} parent=1 // pred_check
      _
    $region35: #{tpu_custom_call.1} parent=1 // pred_check_branch
      %463 = sbr.rel (0) target = $region37
    $region36: #{tpu_custom_call.1} parent=1 // pred_region
      %464 = dma.done [#allocation5], 16
    $region37: #{tpu_custom_call.1} parent=1 // pred_fallthru
      _
    %465 = vsyncpa [#allocation4], 1
    %466 = vsyncpa [#allocation7], 1
    %467 = vsyncpa [#allocation5], 1

</llo_original>
